<compile_context>
chip_gen: v6e
topology: v6e:2x2x1
jax: 0.10.0
libtpu: 0.0.40
codegen_flags: <defaults>
</compile_context>

<pallas_src>
import functools

import jax
import jax.numpy as jnp
from jax.experimental import pallas as pl
from jax.experimental.pallas import tpu as pltpu


def _round_up(x, m):
    return ((x + m - 1) // m) * m


# ----------------------------------------------------------------------------
# Activations
# ----------------------------------------------------------------------------
def _mish_fast(x):
    """Mish via a single exp + approximate reciprocal (EUP-friendly).

    tanh(softplus(x)) == ((1+e^x)^2 - 1) / ((1+e^x)^2 + 1).
    The x > 20 branch is linear (tanh(softplus(x)) ~= 1) and also keeps the
    exp argument bounded so f32 never overflows.
    """
    e = jnp.exp(jnp.minimum(x, 20.0))
    n = (1.0 + e) * (1.0 + e)
    t = (n - 1.0) * pl.reciprocal(n + 1.0, approx=True)
    return jnp.where(x > 20.0, x, x * t)


def _mish_ref(x):
    """Exact Mish (pure-JAX reference)."""
    sp = jnp.where(x > 20.0, x, jnp.log1p(jnp.exp(jnp.minimum(x, 20.0))))
    return x * jnp.tanh(sp)


# ----------------------------------------------------------------------------
# Kernel
# ----------------------------------------------------------------------------
def encoder_kernel(a_ref, s_ref,
                   w1a_ref, w1s_ref, b1_ref,
                   w2_ref, b2_ref,
                   w3_ref, b3_ref,
                   wh_ref, bh_ref,
                   out_ref, *, n_chunks, chunk):
    """Whole MLP hot path: bf16 MXU matmuls (f32 accumulate), f32 VPU bias-add,
    single-exp Mish on the EUP. Static row-chunk loop lets the LLO scheduler
    overlap chunk j's matmuls with chunk j-1's Mish."""
    f32 = jnp.float32
    bf16 = jnp.bfloat16

    # Weights stay bf16 (native MXU operand dtype); biases are f32.
    w1a = w1a_ref[...]
    w1s = w1s_ref[...]
    w2 = w2_ref[...]
    w3 = w3_ref[...]
    wh = wh_ref[...]
    b1 = b1_ref[...]
    b2 = b2_ref[...]
    b3 = b3_ref[...]
    bh = bh_ref[...]

    for j in range(n_chunks):                 # static unroll: independent chains
        rows = pl.ds(j * chunk, chunk)        # static start, multiple of 8
        a = a_ref[rows, :]                    # bf16
        s = s_ref[rows, :]                    # bf16

        # First layer with the concat folded in: cat([a,s]) @ w1 == a@w1a + s@w1s.
        h = (jnp.dot(a, w1a, preferred_element_type=f32)
             + jnp.dot(s, w1s, preferred_element_type=f32)
             + b1)
        h = _mish_fast(h)

        h = jnp.dot(h.astype(bf16), w2, preferred_element_type=f32) + b2
        h = _mish_fast(h)

        h = jnp.dot(h.astype(bf16), w3, preferred_element_type=f32) + b3
        h = _mish_fast(h)

        # Fused mean||log_var head, zero-padded to 128 lanes -> one lane-dense
        # unmasked store per chunk.
        out_ref[rows, :] = (jnp.dot(h.astype(bf16), wh, preferred_element_type=f32)
                            + bh).astype(out_ref.dtype)


# ----------------------------------------------------------------------------
# Wrapper
# ----------------------------------------------------------------------------
def encoder_forward(a, s, kparams, *, action_dim):
    """a: (B, action_dim), s: (B, state_dim). Returns (mean, log_var) as f32."""
    (w1a, w1s, b1, w2, b2, w3, b3, wh, bh) = kparams

    # bf16 activations into the kernel: halves the a/s tile DMA and feeds the
    # MXU its native bf16 x bf16 -> f32 path with no in-kernel casts.
    a = a.astype(jnp.bfloat16)
    s = s.astype(jnp.bfloat16)

    B = a.shape[0]
    A_in = w1a.shape[0]       # action_dim (K of the first dot)
    S_in = w1s.shape[0]       # state_dim
    NH = wh.shape[1]          # padded (>=128, multiple of 128) head width

    # Batch tiling:
    #  * small B: one tile (rounded up to 8 sublanes).
    #  * B in [256, 512): tm=128 so the grid has >=2 steps and both v7x
    #    TensorCores get work under dimension_semantics=("parallel",).
    #  * large B: big tiles (<=1024 rows) amortize the ~0.35us per-step grid
    #    overhead; rounded to 32 rows so the kernel can sub-chunk evenly.
    if B < 256:
        tm = _round_up(max(B, 1), 8)
    elif B < 512:
        tm = 128
    else:
        tm = min(1024, _round_up(-(-B // 2), 32))
    Bp = _round_up(B, tm)
    if Bp != B:
        a = jnp.pad(a, ((0, Bp - B), (0, 0)))
        s = jnp.pad(s, ((0, Bp - B), (0, 0)))
    grid = (Bp // tm,)

    # In-kernel row sub-chunks for MXU/EUP overlap (chunk rows multiple of 8).
    if tm >= 512 and tm % 32 == 0:
        n_chunks = 4
    elif tm >= 128 and tm % 16 == 0:
        n_chunks = 2
    else:
        n_chunks = 1
    chunk = tm // n_chunks

    def resident(shape):
        # Weights/biases: constant block index -> DMA'd once, stay in VMEM.
        return pl.BlockSpec(shape, lambda i: (0,) * len(shape))

    in_specs = [
        pl.BlockSpec((tm, A_in), lambda i: (i, 0)),   # a tile (bf16)
        pl.BlockSpec((tm, S_in), lambda i: (i, 0)),   # s tile (bf16)
        resident(w1a.shape), resident(w1s.shape), resident(b1.shape),
        resident(w2.shape), resident(b2.shape),
        resident(w3.shape), resident(b3.shape),
        resident(wh.shape), resident(bh.shape),
    ]

    kernel = functools.partial(encoder_kernel, n_chunks=n_chunks, chunk=chunk)

    out = pl.pallas_call(
        kernel,
        out_shape=jax.ShapeDtypeStruct((Bp, NH), jnp.float32),
        grid=grid,
        in_specs=in_specs,
        out_specs=pl.BlockSpec((tm, NH), lambda i: (i, 0)),
        compiler_params=pltpu.CompilerParams(
            dimension_semantics=("parallel",),
            vmem_limit_bytes=32 * 1024 * 1024,
        ),
    )(a, s, w1a, w1s, b1, w2, b2, w3, b3, wh, bh)

    mean = out[:B, :action_dim]
    log_var = out[:B, action_dim:2 * action_dim]
    return mean, log_var


# ----------------------------------------------------------------------------
# Parameters
# ----------------------------------------------------------------------------
def init_params(key, state_dim, action_dim, hidden=256):
    """Logical params mirroring the PyTorch module.

    Weights are stored (in_features, out_features) so y = x @ W + b matches
    PyTorch's x @ W_pt.T + b. Weights are kept in bfloat16 (halved HBM
    traffic, native MXU dtype); biases stay float32.
    """
    input_dim = state_dim + action_dim
    dims = [
        (input_dim, hidden),   # mid_layer[0]
        (hidden, hidden),      # mid_layer[2]
        (hidden, hidden),      # mid_layer[4]
        (hidden, action_dim),  # mean_layer
        (hidden, action_dim),  # log_var_layer
    ]
    params = []
    for i, (fi, fo) in enumerate(dims):
        kw, kb, key = jax.random.split(jax.random.fold_in(key, i), 3)
        bound = 1.0 / jnp.sqrt(fi)  # matches nn.Linear default uniform bound
        w = jax.random.uniform(kw, (fi, fo), jnp.float32, -bound, bound)
        b = jax.random.uniform(kb, (1, fo), jnp.float32, -bound, bound)
        params += [w.astype(jnp.bfloat16), b]
    return tuple(params)  # (w1,b1,w2,b2,w3,b3,wm,bm,wv,bv)


def prepare_kernel_params(params, action_dim):
    """One-time prep: split w1 (concat folded into kernel), fuse+pad the heads."""
    (w1, b1, w2, b2, w3, b3, wm, bm, wv, bv) = params
    hidden = w2.shape[0]
    A = action_dim

    w1a = w1[:A, :]            # rows of w1 hit by `a`
    w1s = w1[A:, :]            # rows of w1 hit by `s`

    nh = max(128, _round_up(2 * A, 128))   # lane-dense head width
    wh = jnp.zeros((hidden, nh), jnp.bfloat16)
    wh = wh.at[:, :A].set(wm).at[:, A:2 * A].set(wv)
    bh = jnp.zeros((1, nh), jnp.float32)
    bh = bh.at[0, :A].set(bm[0]).at[0, A:2 * A].set(bv[0])

    return (w1a, w1s, b1, w2, b2, w3, b3, wh, bh)


# ----------------------------------------------------------------------------
# Pure-JAX reference (exact Mish, f32 activations, same bf16 weights)
# ----------------------------------------------------------------------------
def encoder_reference(a, s, params):
    (w1, b1, w2, b2, w3, b3, wm, bm, wv, bv) = params
    f32 = lambda w: w.astype(jnp.float32)
    x = jnp.concatenate([a, s], axis=1).astype(jnp.float32)
    h = _mish_ref(x @ f32(w1) + b1)
    h = _mish_ref(h @ f32(w2) + b2)
    h = _mish_ref(h @ f32(w3) + b3)
    return h @ f32(wm) + bm, h @ f32(wv) + bv


if __name__ == "__main__":
    key = jax.random.PRNGKey(0)
    batch, state_dim, action_dim = 8, 16, 8
    max_action = 1.0  # unused in forward, kept for parity with the module

    ka, ks, kp = jax.random.split(key, 3)
    a = jax.random.normal(ka, (batch, action_dim), jnp.float32)
    s = jax.random.normal(ks, (batch, state_dim), jnp.float32)

    params = init_params(kp, state_dim, action_dim)
    kparams = prepare_kernel_params(params, action_dim)

    fwd = jax.jit(functools.partial(encoder_forward, action_dim=action_dim))
    mean, log_var = fwd(a, s, kparams)
    jax.block_until_ready((mean, log_var))

    mean_ref, log_var_ref = encoder_reference(a, s, params)
    assert mean.shape == (batch, action_dim)
    assert log_var.shape == (batch, action_dim)
    # Tolerance covers bf16 rounding of activations at the MXU operands plus
    # the approximate EUP reciprocal inside the fast Mish.
    assert jnp.allclose(mean, mean_ref, atol=2e-2, rtol=2e-2)
    assert jnp.allclose(log_var, log_var_ref, atol=2e-2, rtol=2e-2)

    print("KERNEL_OK")
</pallas_src>

<mosaic_0001>
module attributes {stable_mosaic.version = 11 : i64} {
  func.func @encoder_kernel(%arg0: i32, %arg1: memref<8x8xbf16, #tpu.memory_space<vmem>>, %arg2: memref<8x16xbf16, #tpu.memory_space<vmem>>, %arg3: memref<8x256xbf16, #tpu.memory_space<vmem>>, %arg4: memref<16x256xbf16, #tpu.memory_space<vmem>>, %arg5: memref<1x256xf32, #tpu.memory_space<vmem>>, %arg6: memref<256x256xbf16, #tpu.memory_space<vmem>>, %arg7: memref<1x256xf32, #tpu.memory_space<vmem>>, %arg8: memref<256x256xbf16, #tpu.memory_space<vmem>>, %arg9: memref<1x256xf32, #tpu.memory_space<vmem>>, %arg10: memref<256x128xbf16, #tpu.memory_space<vmem>>, %arg11: memref<1x128xf32, #tpu.memory_space<vmem>>, %arg12: memref<8x128xf32, #tpu.memory_space<vmem>>) attributes {dimension_semantics = [#tpu.dimension_semantics<parallel>], iteration_bounds = array<i64: 1>, scalar_prefetch = 0 : i64, scratch_operands = 0 : i64, tpu.core_type = #tpu.core_type<tc>, window_params = [{transform_indices = @transform_0, window_bounds = array<i64: 8, 8>}, {transform_indices = @transform_1, window_bounds = array<i64: 8, 16>}, {pipeline_mode = #tpu.pipeline_mode<synchronous>, transform_indices = @transform_2, window_bounds = array<i64: 8, 256>}, {pipeline_mode = #tpu.pipeline_mode<synchronous>, transform_indices = @transform_3, window_bounds = array<i64: 16, 256>}, {pipeline_mode = #tpu.pipeline_mode<synchronous>, transform_indices = @transform_4, window_bounds = array<i64: 1, 256>}, {pipeline_mode = #tpu.pipeline_mode<synchronous>, transform_indices = @transform_5, window_bounds = array<i64: 256, 256>}, {pipeline_mode = #tpu.pipeline_mode<synchronous>, transform_indices = @transform_6, window_bounds = array<i64: 1, 256>}, {pipeline_mode = #tpu.pipeline_mode<synchronous>, transform_indices = @transform_7, window_bounds = array<i64: 256, 256>}, {pipeline_mode = #tpu.pipeline_mode<synchronous>, transform_indices = @transform_8, window_bounds = array<i64: 1, 256>}, {pipeline_mode = #tpu.pipeline_mode<synchronous>, transform_indices = @transform_9, window_bounds = array<i64: 256, 128>}, {pipeline_mode = #tpu.pipeline_mode<synchronous>, transform_indices = @transform_10, window_bounds = array<i64: 1, 128>}, {transform_indices = @transform_11, window_bounds = array<i64: 8, 128>}]} {
    %c0 = arith.constant 0 : index
    %c0_0 = arith.constant 0 : index
    %0 = vector.load %arg3[%c0, %c0_0] : memref<8x256xbf16, #tpu.memory_space<vmem>>, vector<8x256xbf16>
    %c0_1 = arith.constant 0 : index
    %c0_2 = arith.constant 0 : index
    %1 = vector.load %arg4[%c0_1, %c0_2] : memref<16x256xbf16, #tpu.memory_space<vmem>>, vector<16x256xbf16>
    %c0_3 = arith.constant 0 : index
    %c0_4 = arith.constant 0 : index
    %2 = vector.load %arg6[%c0_3, %c0_4] : memref<256x256xbf16, #tpu.memory_space<vmem>>, vector<256x256xbf16>
    %c0_5 = arith.constant 0 : index
    %c0_6 = arith.constant 0 : index
    %3 = vector.load %arg8[%c0_5, %c0_6] : memref<256x256xbf16, #tpu.memory_space<vmem>>, vector<256x256xbf16>
    %c0_7 = arith.constant 0 : index
    %c0_8 = arith.constant 0 : index
    %4 = vector.load %arg10[%c0_7, %c0_8] : memref<256x128xbf16, #tpu.memory_space<vmem>>, vector<256x128xbf16>
    %c0_9 = arith.constant 0 : index
    %c0_10 = arith.constant 0 : index
    %5 = vector.load %arg5[%c0_9, %c0_10] : memref<1x256xf32, #tpu.memory_space<vmem>>, vector<1x256xf32>
    %c0_11 = arith.constant 0 : index
    %c0_12 = arith.constant 0 : index
    %6 = vector.load %arg7[%c0_11, %c0_12] : memref<1x256xf32, #tpu.memory_space<vmem>>, vector<1x256xf32>
    %c0_13 = arith.constant 0 : index
    %c0_14 = arith.constant 0 : index
    %7 = vector.load %arg9[%c0_13, %c0_14] : memref<1x256xf32, #tpu.memory_space<vmem>>, vector<1x256xf32>
    %c0_15 = arith.constant 0 : index
    %c0_16 = arith.constant 0 : index
    %8 = vector.load %arg11[%c0_15, %c0_16] : memref<1x128xf32, #tpu.memory_space<vmem>>, vector<1x128xf32>
    %c0_17 = arith.constant 0 : index
    %c0_18 = arith.constant 0 : index
    %9 = vector.load %arg1[%c0_17, %c0_18] : memref<8x8xbf16, #tpu.memory_space<vmem>>, vector<8x8xbf16>
    %c0_19 = arith.constant 0 : index
    %c0_20 = arith.constant 0 : index
    %10 = vector.load %arg2[%c0_19, %c0_20] : memref<8x16xbf16, #tpu.memory_space<vmem>>, vector<8x16xbf16>
    %cst = arith.constant dense<0.000000e+00> : vector<8x256xf32>
    %11 = tpu.matmul %9, %0, %cst {dimension_numbers = #tpu.dot_dimension_numbers<[1], [0], [0], [1], [0, 0, 1, 1], [], []>} : vector<8x8xbf16>, vector<8x256xbf16>, vector<8x256xf32> -> vector<8x256xf32>
    %cst_21 = arith.constant dense<0.000000e+00> : vector<8x256xf32>
    %12 = tpu.matmul %10, %1, %cst_21 {dimension_numbers = #tpu.dot_dimension_numbers<[1], [0], [0], [1], [0, 0, 1, 1], [], []>} : vector<8x16xbf16>, vector<16x256xbf16>, vector<8x256xf32> -> vector<8x256xf32>
    %13 = arith.addf %11, %12 : vector<8x256xf32>
    %14 = vector.broadcast %5 : vector<1x256xf32> to vector<8x256xf32>
    %15 = arith.addf %13, %14 : vector<8x256xf32>
    %cst_22 = arith.constant 2.000000e+01 : f32
    %16 = vector.broadcast %cst_22 : f32 to vector<8x256xf32>
    %17 = arith.minimumf %15, %16 : vector<8x256xf32>
    %18 = math.exp %17 : vector<8x256xf32>
    %cst_23 = arith.constant 1.000000e+00 : f32
    %19 = vector.broadcast %cst_23 : f32 to vector<8x256xf32>
    %20 = arith.addf %19, %18 : vector<8x256xf32>
    %cst_24 = arith.constant 1.000000e+00 : f32
    %21 = vector.broadcast %cst_24 : f32 to vector<8x256xf32>
    %22 = arith.addf %21, %18 : vector<8x256xf32>
    %23 = arith.mulf %20, %22 : vector<8x256xf32>
    %cst_25 = arith.constant 1.000000e+00 : f32
    %24 = vector.broadcast %cst_25 : f32 to vector<8x256xf32>
    %25 = arith.subf %23, %24 : vector<8x256xf32>
    %cst_26 = arith.constant 1.000000e+00 : f32
    %26 = vector.broadcast %cst_26 : f32 to vector<8x256xf32>
    %27 = arith.addf %23, %26 : vector<8x256xf32>
    %28 = tpu.reciprocal %27 {approx = true} : vector<8x256xf32> -> vector<8x256xf32>
    %29 = arith.mulf %25, %28 : vector<8x256xf32>
    %cst_27 = arith.constant 2.000000e+01 : f32
    %30 = vector.broadcast %cst_27 : f32 to vector<8x256xf32>
    %31 = arith.cmpf ogt, %15, %30 : vector<8x256xf32>
    %32 = arith.mulf %15, %29 : vector<8x256xf32>
    %33 = arith.select %31, %15, %32 : vector<8x256xi1>, vector<8x256xf32>
    %34 = arith.truncf %33 : vector<8x256xf32> to vector<8x256xbf16>
    %cst_28 = arith.constant dense<0.000000e+00> : vector<8x256xf32>
    %35 = tpu.matmul %34, %2, %cst_28 {dimension_numbers = #tpu.dot_dimension_numbers<[1], [0], [0], [1], [0, 0, 1, 1], [], []>} : vector<8x256xbf16>, vector<256x256xbf16>, vector<8x256xf32> -> vector<8x256xf32>
    %36 = vector.broadcast %6 : vector<1x256xf32> to vector<8x256xf32>
    %37 = arith.addf %35, %36 : vector<8x256xf32>
    %cst_29 = arith.constant 2.000000e+01 : f32
    %38 = vector.broadcast %cst_29 : f32 to vector<8x256xf32>
    %39 = arith.minimumf %37, %38 : vector<8x256xf32>
    %40 = math.exp %39 : vector<8x256xf32>
    %cst_30 = arith.constant 1.000000e+00 : f32
    %41 = vector.broadcast %cst_30 : f32 to vector<8x256xf32>
    %42 = arith.addf %41, %40 : vector<8x256xf32>
    %cst_31 = arith.constant 1.000000e+00 : f32
    %43 = vector.broadcast %cst_31 : f32 to vector<8x256xf32>
    %44 = arith.addf %43, %40 : vector<8x256xf32>
    %45 = arith.mulf %42, %44 : vector<8x256xf32>
    %cst_32 = arith.constant 1.000000e+00 : f32
    %46 = vector.broadcast %cst_32 : f32 to vector<8x256xf32>
    %47 = arith.subf %45, %46 : vector<8x256xf32>
    %cst_33 = arith.constant 1.000000e+00 : f32
    %48 = vector.broadcast %cst_33 : f32 to vector<8x256xf32>
    %49 = arith.addf %45, %48 : vector<8x256xf32>
    %50 = tpu.reciprocal %49 {approx = true} : vector<8x256xf32> -> vector<8x256xf32>
    %51 = arith.mulf %47, %50 : vector<8x256xf32>
    %cst_34 = arith.constant 2.000000e+01 : f32
    %52 = vector.broadcast %cst_34 : f32 to vector<8x256xf32>
    %53 = arith.cmpf ogt, %37, %52 : vector<8x256xf32>
    %54 = arith.mulf %37, %51 : vector<8x256xf32>
    %55 = arith.select %53, %37, %54 : vector<8x256xi1>, vector<8x256xf32>
    %56 = arith.truncf %55 : vector<8x256xf32> to vector<8x256xbf16>
    %cst_35 = arith.constant dense<0.000000e+00> : vector<8x256xf32>
    %57 = tpu.matmul %56, %3, %cst_35 {dimension_numbers = #tpu.dot_dimension_numbers<[1], [0], [0], [1], [0, 0, 1, 1], [], []>} : vector<8x256xbf16>, vector<256x256xbf16>, vector<8x256xf32> -> vector<8x256xf32>
    %58 = vector.broadcast %7 : vector<1x256xf32> to vector<8x256xf32>
    %59 = arith.addf %57, %58 : vector<8x256xf32>
    %cst_36 = arith.constant 2.000000e+01 : f32
    %60 = vector.broadcast %cst_36 : f32 to vector<8x256xf32>
    %61 = arith.minimumf %59, %60 : vector<8x256xf32>
    %62 = math.exp %61 : vector<8x256xf32>
    %cst_37 = arith.constant 1.000000e+00 : f32
    %63 = vector.broadcast %cst_37 : f32 to vector<8x256xf32>
    %64 = arith.addf %63, %62 : vector<8x256xf32>
    %cst_38 = arith.constant 1.000000e+00 : f32
    %65 = vector.broadcast %cst_38 : f32 to vector<8x256xf32>
    %66 = arith.addf %65, %62 : vector<8x256xf32>
    %67 = arith.mulf %64, %66 : vector<8x256xf32>
    %cst_39 = arith.constant 1.000000e+00 : f32
    %68 = vector.broadcast %cst_39 : f32 to vector<8x256xf32>
    %69 = arith.subf %67, %68 : vector<8x256xf32>
    %cst_40 = arith.constant 1.000000e+00 : f32
    %70 = vector.broadcast %cst_40 : f32 to vector<8x256xf32>
    %71 = arith.addf %67, %70 : vector<8x256xf32>
    %72 = tpu.reciprocal %71 {approx = true} : vector<8x256xf32> -> vector<8x256xf32>
    %73 = arith.mulf %69, %72 : vector<8x256xf32>
    %cst_41 = arith.constant 2.000000e+01 : f32
    %74 = vector.broadcast %cst_41 : f32 to vector<8x256xf32>
    %75 = arith.cmpf ogt, %59, %74 : vector<8x256xf32>
    %76 = arith.mulf %59, %73 : vector<8x256xf32>
    %77 = arith.select %75, %59, %76 : vector<8x256xi1>, vector<8x256xf32>
    %78 = arith.truncf %77 : vector<8x256xf32> to vector<8x256xbf16>
    %cst_42 = arith.constant dense<0.000000e+00> : vector<8x128xf32>
    %79 = tpu.matmul %78, %4, %cst_42 {dimension_numbers = #tpu.dot_dimension_numbers<[1], [0], [0], [1], [0, 0, 1, 1], [], []>} : vector<8x256xbf16>, vector<256x128xbf16>, vector<8x128xf32> -> vector<8x128xf32>
    %80 = vector.broadcast %8 : vector<1x128xf32> to vector<8x128xf32>
    %81 = arith.addf %79, %80 : vector<8x128xf32>
    %c0_43 = arith.constant 0 : index
    %c0_44 = arith.constant 0 : index
    %82 = vector.load %arg12[%c0_43, %c0_44] : memref<8x128xf32, #tpu.memory_space<vmem>>, vector<8x128xf32>
    tpu.vector_store %arg12[%c0_43, %c0_44], %81 {strides = array<i32>} : memref<8x128xf32, #tpu.memory_space<vmem>>, vector<8x128xf32>,
    return
  }
  func.func @transform_0(%arg0: i32) -> (i32, i32) {
    %c0_i32 = arith.constant 0 : i32
    %c0_i32_0 = arith.constant 0 : i32
    return %arg0, %c0_i32 : i32, i32
  }
  func.func @transform_1(%arg0: i32) -> (i32, i32) {
    %c0_i32 = arith.constant 0 : i32
    %c0_i32_0 = arith.constant 0 : i32
    return %arg0, %c0_i32 : i32, i32
  }
  func.func @transform_2(%arg0: i32) -> (i32, i32) {
    %c0_i32 = arith.constant 0 : i32
    %c0_i32_0 = arith.constant 0 : i32
    %c0_i32_1 = arith.constant 0 : i32
    return %c0_i32, %c0_i32_0 : i32, i32
  }
  func.func @transform_3(%arg0: i32) -> (i32, i32) {
    %c0_i32 = arith.constant 0 : i32
    %c0_i32_0 = arith.constant 0 : i32
    %c0_i32_1 = arith.constant 0 : i32
    return %c0_i32, %c0_i32_0 : i32, i32
  }
  func.func @transform_4(%arg0: i32) -> (i32, i32) {
    %c0_i32 = arith.constant 0 : i32
    %c0_i32_0 = arith.constant 0 : i32
    %c0_i32_1 = arith.constant 0 : i32
    return %c0_i32, %c0_i32_0 : i32, i32
  }
  func.func @transform_5(%arg0: i32) -> (i32, i32) {
    %c0_i32 = arith.constant 0 : i32
    %c0_i32_0 = arith.constant 0 : i32
    %c0_i32_1 = arith.constant 0 : i32
    return %c0_i32, %c0_i32_0 : i32, i32
  }
  func.func @transform_6(%arg0: i32) -> (i32, i32) {
    %c0_i32 = arith.constant 0 : i32
    %c0_i32_0 = arith.constant 0 : i32
    %c0_i32_1 = arith.constant 0 : i32
    return %c0_i32, %c0_i32_0 : i32, i32
  }
  func.func @transform_7(%arg0: i32) -> (i32, i32) {
    %c0_i32 = arith.constant 0 : i32
    %c0_i32_0 = arith.constant 0 : i32
    %c0_i32_1 = arith.constant 0 : i32
    return %c0_i32, %c0_i32_0 : i32, i32
  }
  func.func @transform_8(%arg0: i32) -> (i32, i32) {
    %c0_i32 = arith.constant 0 : i32
    %c0_i32_0 = arith.constant 0 : i32
    %c0_i32_1 = arith.constant 0 : i32
    return %c0_i32, %c0_i32_0 : i32, i32
  }
  func.func @transform_9(%arg0: i32) -> (i32, i32) {
    %c0_i32 = arith.constant 0 : i32
    %c0_i32_0 = arith.constant 0 : i32
    %c0_i32_1 = arith.constant 0 : i32
    return %c0_i32, %c0_i32_0 : i32, i32
  }
  func.func @transform_10(%arg0: i32) -> (i32, i32) {
    %c0_i32 = arith.constant 0 : i32
    %c0_i32_0 = arith.constant 0 : i32
    %c0_i32_1 = arith.constant 0 : i32
    return %c0_i32, %c0_i32_0 : i32, i32
  }
  func.func @transform_11(%arg0: i32) -> (i32, i32) {
    %c0_i32 = arith.constant 0 : i32
    %c0_i32_0 = arith.constant 0 : i32
    return %arg0, %c0_i32 : i32, i32
  }
}

</mosaic_0001>

<llo_original>
// kernel: encoder_forward.1
$region0: #{encoder_forward.1}
  #allocation0 [shape = 'u32[]', space=smem, size = 0x4, offset = 0x4, fixed_abs, tag = 'smem constant byte address 0x4 - core index']
  #allocation1 [shape = 'u32[144,128]{1,0:T(1,128)}', space=vmem, size = 0x12000, scoped, tag = 'internal scratch']
  %s0 = inlined_call_operand.vmem [shape: bf16[8,8], index: 0, kind: input, shape index: {}]
  %s1 = inlined_call_operand.vmem [shape: bf16[8,16], index: 1, kind: input, shape index: {}]
  %s2 = inlined_call_operand.vmem [shape: bf16[8,256], index: 2, kind: input, shape index: {}]
  %s3 = inlined_call_operand.vmem [shape: bf16[16,256], index: 3, kind: input, shape index: {}]
  %s4 = inlined_call_operand.vmem [shape: f32[1,256], index: 4, kind: input, shape index: {}]
  %s5 = inlined_call_operand.hbm [shape: bf16[256,256], index: 5, kind: input, shape index: {}]
  %s6 = inlined_call_operand.vmem [shape: f32[1,256], index: 6, kind: input, shape index: {}]
  %s7 = inlined_call_operand.hbm [shape: bf16[256,256], index: 7, kind: input, shape index: {}]
  %s8 = inlined_call_operand.vmem [shape: f32[1,256], index: 8, kind: input, shape index: {}]
  %s9 = inlined_call_operand.hbm [shape: bf16[256,128], index: 9, kind: input, shape index: {}]
  %s10 = inlined_call_operand.vmem [shape: f32[1,128], index: 10, kind: input, shape index: {}]
  %s11 = inlined_call_operand.vmem [shape: f32[8,128], index: 11, kind: output, shape index: {}]
  %s12 = sld [smem:[#allocation0]]
  $region66: #{encoder_forward.1} parent=0
    _
  %s14 = ssub.s32 1, %s12
  %s15 = scalar_select 0, %s14, %s12
  $region1: #{encoder_forward.1} parent=0
    #allocation2 [shape = 'u8[131072]{0}', space=vmem, size = 0x20000, scoped, tag = 'input window, operand 5, single buffered']
    #allocation3 [shape = 's32[1]{0}', space=sflag, size = 0x4, scoped, tag = 'scoped memory for encoder_forward.1']
    #allocation4 [shape = 'u8[131072]{0}', space=vmem, size = 0x20000, scoped, tag = 'input window, operand 7, single buffered']
    #allocation5 [shape = 's32[1]{0}', space=sflag, size = 0x4, scoped, tag = 'scoped memory for encoder_forward.1']
    #allocation6 [shape = 'u8[65536]{0}', space=vmem, size = 0x10000, scoped, tag = 'input window, operand 9, single buffered']
    %16 = vsyncpa [#allocation3], 0
    %17 = vsyncpa [#allocation5], 0
    // Predicated region
    $region2: #{encoder_forward.1} parent=1 // pred_check
      _
    $region3: #{encoder_forward.1} parent=1 // pred_check_branch
      %19 = sbr.rel (0) target = $region5
    $region4: #{encoder_forward.1} parent=1 // pred_region
      _
    $region5: #{encoder_forward.1} parent=1 // pred_fallthru
      _
    // Predicated region
    $region6: #{encoder_forward.1} parent=1 // pred_check
      _
    $region7: #{encoder_forward.1} parent=1 // pred_check_branch
      %21 = sbr.rel (0) target = $region9
    $region8: #{encoder_forward.1} parent=1 // pred_region
      _
    $region9: #{encoder_forward.1} parent=1 // pred_fallthru
      _
    // Predicated region
    $region10: #{encoder_forward.1} parent=1 // pred_check
      _
    $region11: #{encoder_forward.1} parent=1 // pred_check_branch
      %23 = sbr.rel (0) target = $region13
    $region12: #{encoder_forward.1} parent=1 // pred_region
      _
    $region13: #{encoder_forward.1} parent=1 // pred_fallthru
      _
    // Predicated region
    $region14: #{encoder_forward.1} parent=1 // pred_check
      _
    $region15: #{encoder_forward.1} parent=1 // pred_check_branch
      %25 = sbr.rel (0) target = $region17
    $region16: #{encoder_forward.1} parent=1 // pred_region
      _
    $region17: #{encoder_forward.1} parent=1 // pred_fallthru
      _
    // Predicated region
    $region18: #{encoder_forward.1} parent=1 // pred_check
      _
    $region19: #{encoder_forward.1} parent=1 // pred_check_branch
      %27 = sbr.rel (0) target = $region21
    $region20: #{encoder_forward.1} parent=1 // pred_region
      _
    $region21: #{encoder_forward.1} parent=1 // pred_fallthru
      _
    // Predicated region
    $region22: #{encoder_forward.1} parent=1 // pred_check
      _
    $region23: #{encoder_forward.1} parent=1 // pred_check_branch
      %29 = sbr.rel (0) target = $region25
    $region24: #{encoder_forward.1} parent=1 // pred_region
      %s31 = ssub.s32 4096, 4096
      %32 = vsyncadd [#allocation3], %s31
      %s33 = sshll.u32 [#allocation2], 4
      %s34 = int_to_ptr.vmem [resolvable:$true] %s33
      %39 = dma.hbm_to_vmem [thread:$0]  %s5, 4096, %s34, [#allocation3], 128, 128, 8
    $region25: #{encoder_forward.1} parent=1 // pred_fallthru
      _
    // Predicated region
    $region26: #{encoder_forward.1} parent=1 // pred_check
      _
    $region27: #{encoder_forward.1} parent=1 // pred_check_branch
      %41 = sbr.rel (0) target = $region29
    $region28: #{encoder_forward.1} parent=1 // pred_region
      _
    $region29: #{encoder_forward.1} parent=1 // pred_fallthru
      _
    // Predicated region
    $region30: #{encoder_forward.1} parent=1 // pred_check
      _
    $region31: #{encoder_forward.1} parent=1 // pred_check_branch
      %43 = sbr.rel (0) target = $region33
    $region32: #{encoder_forward.1} parent=1 // pred_region
      %s45 = ssub.s32 4096, 4096
      %46 = vsyncadd [#allocation5], %s45
      %s47 = sshll.u32 [#allocation4], 4
      %s48 = int_to_ptr.vmem [resolvable:$true] %s47
      %53 = dma.hbm_to_vmem [thread:$0]  %s7, 4096, %s48, [#allocation5], 128, 128, 8
    $region33: #{encoder_forward.1} parent=1 // pred_fallthru
      _
    // Predicated region
    $region34: #{encoder_forward.1} parent=1 // pred_check
      _
    $region35: #{encoder_forward.1} parent=1 // pred_check_branch
      %55 = sbr.rel (0) target = $region37
    $region36: #{encoder_forward.1} parent=1 // pred_region
      _
    $region37: #{encoder_forward.1} parent=1 // pred_fallthru
      _
    // Predicated region
    $region38: #{encoder_forward.1} parent=1 // pred_check
      _
    $region39: #{encoder_forward.1} parent=1 // pred_check_branch
      %57 = sbr.rel (0) target = $region41
    $region40: #{encoder_forward.1} parent=1 // pred_region
      %s59 = ssub.s32 2048, 2048
      %60 = vsyncadd [#allocation5], %s59
      %s61 = sshll.u32 [#allocation6], 4
      %s62 = int_to_ptr.vmem [resolvable:$true] %s61
      %67 = dma.hbm_to_vmem [thread:$0]  %s9, 2048, %s62, [#allocation5], 64, 64, 4
    $region41: #{encoder_forward.1} parent=1 // pred_fallthru
      _
    // Predicated region
    $region42: #{encoder_forward.1} parent=1 // pred_check
      _
    $region43: #{encoder_forward.1} parent=1 // pred_check_branch
      %69 = sbr.rel (0) target = $region45
    $region44: #{encoder_forward.1} parent=1 // pred_region
      _
    $region45: #{encoder_forward.1} parent=1 // pred_fallthru
      _
    // Predicated region
    $region46: #{encoder_forward.1} parent=1 // pred_check
      _
    $region47: #{encoder_forward.1} parent=1 // pred_check_branch
      %71 = sbr.rel (0) target = $region49
    $region48: #{encoder_forward.1} parent=1 // pred_region
      %72 = dma.done [#allocation3], 4096
    $region49: #{encoder_forward.1} parent=1 // pred_fallthru
      _
    // Predicated region
    $region50: #{encoder_forward.1} parent=1 // pred_check
      _
    $region51: #{encoder_forward.1} parent=1 // pred_check_branch
      %74 = sbr.rel (0) target = $region53
    $region52: #{encoder_forward.1} parent=1 // pred_region
      %75 = dma.done [#allocation5], 4096
    $region53: #{encoder_forward.1} parent=1 // pred_fallthru
      _
    // Predicated region
    $region54: #{encoder_forward.1} parent=1 // pred_check
      _
    $region55: #{encoder_forward.1} parent=1 // pred_check_branch
      %77 = sbr.rel (0) target = $region57
    $region56: #{encoder_forward.1} parent=1 // pred_region
      %78 = dma.done [#allocation5], 2048
    $region57: #{encoder_forward.1} parent=1 // pred_fallthru
      _
    %v80 = vld [vmem:[%s2] sm:$0xff]
    %v81 = vld [vmem:[%s3] sm:$0xff]
    %v82 = vld [vmem:[%s3 + $0x8] sm:$0xff]
    %v83 = vld [vmem:[#allocation2] sm:$0xff]
    %v84 = vld [vmem:[#allocation2 + $0x8] sm:$0xff]
    %v85 = vld [vmem:[#allocation2 + $0x10] sm:$0xff]
    %v86 = vld [vmem:[#allocation2 + $0x18] sm:$0xff]
    %v87 = vld [vmem:[#allocation2 + $0x20] sm:$0xff]
    %v88 = vld [vmem:[#allocation2 + $0x28] sm:$0xff]
    %v89 = vld [vmem:[#allocation2 + $0x30] sm:$0xff]
    %v90 = vld [vmem:[#allocation2 + $0x38] sm:$0xff]
    %v91 = vld [vmem:[#allocation2 + $0x40] sm:$0xff]
    %v92 = vld [vmem:[#allocation2 + $0x48] sm:$0xff]
    %v93 = vld [vmem:[#allocation2 + $0x50] sm:$0xff]
    %v94 = vld [vmem:[#allocation2 + $0x58] sm:$0xff]
    %v95 = vld [vmem:[#allocation2 + $0x60] sm:$0xff]
    %v96 = vld [vmem:[#allocation2 + $0x68] sm:$0xff]
    %v97 = vld [vmem:[#allocation2 + $0x70] sm:$0xff]
    %v98 = vld [vmem:[#allocation2 + $0x78] sm:$0xff]
    %v99 = vld [vmem:[#allocation2 + $0x80] sm:$0xff]
    %v100 = vld [vmem:[#allocation2 + $0x88] sm:$0xff]
    %v101 = vld [vmem:[#allocation2 + $0x90] sm:$0xff]
    %v102 = vld [vmem:[#allocation2 + $0x98] sm:$0xff]
    %v103 = vld [vmem:[#allocation2 + $0xa0] sm:$0xff]
    %v104 = vld [vmem:[#allocation2 + $0xa8] sm:$0xff]
    %v105 = vld [vmem:[#allocation2 + $0xb0] sm:$0xff]
    %v106 = vld [vmem:[#allocation2 + $0xb8] sm:$0xff]
    %v107 = vld [vmem:[#allocation2 + $0xc0] sm:$0xff]
    %v108 = vld [vmem:[#allocation2 + $0xc8] sm:$0xff]
    %v109 = vld [vmem:[#allocation2 + $0xd0] sm:$0xff]
    %v110 = vld [vmem:[#allocation2 + $0xd8] sm:$0xff]
    %v111 = vld [vmem:[#allocation2 + $0xe0] sm:$0xff]
    %v112 = vld [vmem:[#allocation2 + $0xe8] sm:$0xff]
    %v113 = vld [vmem:[#allocation2 + $0xf0] sm:$0xff]
    %v114 = vld [vmem:[#allocation2 + $0xf8] sm:$0xff]
    %v115 = vld [vmem:[#allocation4] sm:$0xff]
    %v116 = vld [vmem:[#allocation4 + $0x8] sm:$0xff]
    %v117 = vld [vmem:[#allocation4 + $0x10] sm:$0xff]
    %v118 = vld [vmem:[#allocation4 + $0x18] sm:$0xff]
    %v119 = vld [vmem:[#allocation4 + $0x20] sm:$0xff]
    %v120 = vld [vmem:[#allocation4 + $0x28] sm:$0xff]
    %v121 = vld [vmem:[#allocation4 + $0x30] sm:$0xff]
    %v122 = vld [vmem:[#allocation4 + $0x38] sm:$0xff]
    %v123 = vld [vmem:[#allocation4 + $0x40] sm:$0xff]
    %v124 = vld [vmem:[#allocation4 + $0x48] sm:$0xff]
    %v125 = vld [vmem:[#allocation4 + $0x50] sm:$0xff]
    %v126 = vld [vmem:[#allocation4 + $0x58] sm:$0xff]
    %v127 = vld [vmem:[#allocation4 + $0x60] sm:$0xff]
    %v128 = vld [vmem:[#allocation4 + $0x68] sm:$0xff]
    %v129 = vld [vmem:[#allocation4 + $0x70] sm:$0xff]
    %v130 = vld [vmem:[#allocation4 + $0x78] sm:$0xff]
    %v131 = vld [vmem:[#allocation4 + $0x80] sm:$0xff]
    %v132 = vld [vmem:[#allocation4 + $0x88] sm:$0xff]
    %v133 = vld [vmem:[#allocation4 + $0x90] sm:$0xff]
    %v134 = vld [vmem:[#allocation4 + $0x98] sm:$0xff]
    %v135 = vld [vmem:[#allocation4 + $0xa0] sm:$0xff]
    %v136 = vld [vmem:[#allocation4 + $0xa8] sm:$0xff]
    %v137 = vld [vmem:[#allocation4 + $0xb0] sm:$0xff]
    %v138 = vld [vmem:[#allocation4 + $0xb8] sm:$0xff]
    %v139 = vld [vmem:[#allocation4 + $0xc0] sm:$0xff]
    %v140 = vld [vmem:[#allocation4 + $0xc8] sm:$0xff]
    %v141 = vld [vmem:[#allocation4 + $0xd0] sm:$0xff]
    %v142 = vld [vmem:[#allocation4 + $0xd8] sm:$0xff]
    %v143 = vld [vmem:[#allocation4 + $0xe0] sm:$0xff]
    %v144 = vld [vmem:[#allocation4 + $0xe8] sm:$0xff]
    %v145 = vld [vmem:[#allocation4 + $0xf0] sm:$0xff]
    %v146 = vld [vmem:[#allocation4 + $0xf8] sm:$0xff]
    %v147 = vld [vmem:[#allocation6] sm:$0xf]
    %v148 = vld [vmem:[#allocation6 + $0x4] sm:$0xf]
    %v149 = vld [vmem:[#allocation6 + $0x8] sm:$0xf]
    %v150 = vld [vmem:[#allocation6 + $0xc] sm:$0xf]
    %v151 = vld [vmem:[#allocation6 + $0x10] sm:$0xf]
    %v152 = vld [vmem:[#allocation6 + $0x14] sm:$0xf]
    %v153 = vld [vmem:[#allocation6 + $0x18] sm:$0xf]
    %v154 = vld [vmem:[#allocation6 + $0x1c] sm:$0xf]
    %v155 = vld [vmem:[#allocation6 + $0x20] sm:$0xf]
    %v156 = vld [vmem:[#allocation6 + $0x24] sm:$0xf]
    %v157 = vld [vmem:[#allocation6 + $0x28] sm:$0xf]
    %v158 = vld [vmem:[#allocation6 + $0x2c] sm:$0xf]
    %v159 = vld [vmem:[#allocation6 + $0x30] sm:$0xf]
    %v160 = vld [vmem:[#allocation6 + $0x34] sm:$0xf]
    %v161 = vld [vmem:[#allocation6 + $0x38] sm:$0xf]
    %v162 = vld [vmem:[#allocation6 + $0x3c] sm:$0xf]
    %v163 = vld [vmem:[#allocation6 + $0x40] sm:$0xf]
    %v164 = vld [vmem:[#allocation6 + $0x44] sm:$0xf]
    %v165 = vld [vmem:[#allocation6 + $0x48] sm:$0xf]
    %v166 = vld [vmem:[#allocation6 + $0x4c] sm:$0xf]
    %v167 = vld [vmem:[#allocation6 + $0x50] sm:$0xf]
    %v168 = vld [vmem:[#allocation6 + $0x54] sm:$0xf]
    %v169 = vld [vmem:[#allocation6 + $0x58] sm:$0xf]
    %v170 = vld [vmem:[#allocation6 + $0x5c] sm:$0xf]
    %v171 = vld [vmem:[#allocation6 + $0x60] sm:$0xf]
    %v172 = vld [vmem:[#allocation6 + $0x64] sm:$0xf]
    %v173 = vld [vmem:[#allocation6 + $0x68] sm:$0xf]
    %v174 = vld [vmem:[#allocation6 + $0x6c] sm:$0xf]
    %v175 = vld [vmem:[#allocation6 + $0x70] sm:$0xf]
    %v176 = vld [vmem:[#allocation6 + $0x74] sm:$0xf]
    %v177 = vld [vmem:[#allocation6 + $0x78] sm:$0xf]
    %v178 = vld [vmem:[#allocation6 + $0x7c] sm:$0xf]
    %v179 = vld [vmem:[%s4] sm:$0x3]
    %v180 = vld [vmem:[%s6] sm:$0x3]
    %v181 = vld [vmem:[%s8] sm:$0x3]
    %v182 = vld [vmem:[%s10] sm:$0x1]
    %v183 = vld [vmem:[%s0] sm:$0xf]
    %v184 = vld [vmem:[%s1] sm:$0xf]
    %v187 = vunpack.c.l.b16 %v81
    %v188 = vunpack.c.h.b16 %v81
    %v189 = vunpack.c.l.b16 %v82
    %v190 = vunpack.c.h.b16 %v82
    %v191 = vpack.c.b16 %v189, %v187
    %v192 = vpack.c.b16 %v190, %v188
    %vm195 = vcmask 130048
    %v197 = vsel %vm195, %v184, 0
    %199 = vmatprep.subr.bf16.mxu0 0
    %200 = vmatpush1.bf16.msra.mxu0 0
    %201 = vmatprep.subr.bf16.mxu0 0
    %202 = vmatpush1.bf16.msra.mxu0 0
    %203 = vmatprep.subr.bf16.mxu0 0
    %204 = vmatpush1.bf16.msra.mxu0 0
    %205 = vmatprep.subr.bf16.mxu0 0
    %206 = vmatpush1.bf16.msra.mxu0 0
    %207 = vmatprep.subr.bf16.mxu0 0
    %208 = vmatpush1.bf16.msra.mxu0 0
    %209 = vmatprep.subr.bf16.mxu0 0
    %210 = vmatpush1.bf16.msra.mxu0 0
    %211 = vmatprep.subr.bf16.mxu0 0
    %212 = vmatpush1.bf16.msra.mxu0 0
    %213 = vmatprep.subr.bf16.mxu0 %v192
    %214 = vmatpush1.bf16.msra.mxu0 %v191
    %215 = vmatprep.subr.bf16.mxu0 0
    %216 = vmatpush2.bf16.msra.mxu0 0
    %217 = vmatprep.subr.bf16.mxu0 0
    %218 = vmatpush2.bf16.msra.mxu0 0
    %219 = vmatprep.subr.bf16.mxu0 0
    %220 = vmatpush2.bf16.msra.mxu0 0
    %221 = vmatprep.subr.bf16.mxu0 0
    %222 = vmatpush2.bf16.msra.mxu0 0
    %223 = vmatprep.subr.bf16.mxu0 0
    %224 = vmatpush2.bf16.msra.mxu0 0
    %225 = vmatprep.subr.bf16.mxu0 0
    %226 = vmatpush2.bf16.msra.mxu0 0
    %227 = vmatprep.subr.bf16.mxu0 0
    %228 = vmatpush2.bf16.msra.mxu0 0
    %229 = vmatprep.subr.bf16.mxu0 0
    %230 = vmatpush2.bf16.msra.mxu0 0
    %231 = vmatprep.mubr.bf16.mxu0 0
    %232 = vmatmul.mubr.bf16.gmra.mxu0 %v197
    %v233 = vpop.f32.mrf.mxu0
    %v234 = vadd.f32 0.0, %v233
    %v235 = vpop.f32.mrf.mxu0
    %v236 = vadd.f32 0.0, %v235
    %v237 = vpop.f32.mrf.mxu0
    %v238 = vpop.f32.mrf.mxu0
    %239 = vdwg.mxu0
    %v241 = vunpack.c.l.b16 %v80
    %v242 = vunpack.c.h.b16 %v80
    %v243 = vpack.c.b16 %v241, %v241
    %v244 = vpack.c.b16 %v242, %v242
    %vm245 = vcmask 64512
    %v247 = vsel %vm245, %v183, 0
    %vm249 = vcmask 1043456
    %v251 = vsel %vm249, %v243, 0
    %v254 = vsel %vm249, %v244, 0
    %256 = vmatprep.subr.bf16.mxu0 0
    %257 = vmatpush1.bf16.msra.mxu0 0
    %258 = vmatprep.subr.bf16.mxu0 0
    %259 = vmatpush1.bf16.msra.mxu0 0
    %260 = vmatprep.subr.bf16.mxu0 0
    %261 = vmatpush1.bf16.msra.mxu0 0
    %262 = vmatprep.subr.bf16.mxu0 0
    %263 = vmatpush1.bf16.msra.mxu0 0
    %264 = vmatprep.subr.bf16.mxu0 0
    %265 = vmatpush1.bf16.msra.mxu0 0
    %266 = vmatprep.subr.bf16.mxu0 0
    %267 = vmatpush1.bf16.msra.mxu0 0
    %268 = vmatprep.subr.bf16.mxu0 0
    %269 = vmatpush1.bf16.msra.mxu0 0
    %270 = vmatprep.subr.bf16.mxu0 %v254
    %271 = vmatpush1.bf16.msra.mxu0 %v251
    %272 = vmatprep.subr.bf16.mxu0 0
    %273 = vmatpush2.bf16.msra.mxu0 0
    %274 = vmatprep.subr.bf16.mxu0 0
    %275 = vmatpush2.bf16.msra.mxu0 0
    %276 = vmatprep.subr.bf16.mxu0 0
    %277 = vmatpush2.bf16.msra.mxu0 0
    %278 = vmatprep.subr.bf16.mxu0 0
    %279 = vmatpush2.bf16.msra.mxu0 0
    %280 = vmatprep.subr.bf16.mxu0 0
    %281 = vmatpush2.bf16.msra.mxu0 0
    %282 = vmatprep.subr.bf16.mxu0 0
    %283 = vmatpush2.bf16.msra.mxu0 0
    %284 = vmatprep.subr.bf16.mxu0 0
    %285 = vmatpush2.bf16.msra.mxu0 0
    %286 = vmatprep.subr.bf16.mxu0 0
    %287 = vmatpush2.bf16.msra.mxu0 0
    %288 = vmatprep.mubr.bf16.mxu0 0
    %289 = vmatmul.mubr.bf16.gmra.mxu0 %v247
    %v290 = vpop.f32.mrf.mxu0
    %v291 = vadd.f32 %v234, %v290
    %v292 = vpop.f32.mrf.mxu0
    %v293 = vadd.f32 %v236, %v292
    %v294 = vpop.f32.mrf.mxu0
    %v295 = vpop.f32.mrf.mxu0
    %296 = vdwg.mxu0
    %v298 = vlaneseq
    %v299 = vshrl.u32 %v298, 7
    %v300 = vsub.s32 0, %v299
    %v301 = vrot.slane %v179, %v300
    %v302 = vlaneseq
    %v303 = vshrl.u32 %v302, 7
    %v304 = vsub.s32 1, %v303
    %v305 = vrot.slane %v179, %v304
    %v308 = vadd.f32 %v291, %v301
    %v309 = vadd.f32 %v293, %v305
    %v310 = vmin.f32 %v308, 20.0
    %v311 = vmin.f32 %v309, 20.0
    %v312 = vmul.f32 %v310, 1.442695
    %v313 = vpow.pop %v312
    %v314 = vmul.f32 %v311, 1.442695
    %v315 = vpow.pop %v314
    %v316 = vadd.f32 %v313, 1.0
    %v317 = vadd.f32 %v315, 1.0
    %v318 = vmul.f32 %v316, %v316
    %v319 = vmul.f32 %v317, %v317
    %v320 = vsub.f32 %v318, 1.0
    %v321 = vsub.f32 %v319, 1.0
    %v322 = vadd.f32 %v318, 1.0
    %v323 = vadd.f32 %v319, 1.0
    %v324 = vrcp.pop %v322
    %v325 = vrcp.pop %v323
    %v326 = vmul.f32 %v320, %v324
    %v327 = vmul.f32 %v321, %v325
    %vm328 = vcmp.gt.f32.partialorder %v308, 20.0
    %vm329 = vcmp.gt.f32.partialorder %v309, 20.0
    %v330 = vmul.f32 %v308, %v326
    %v331 = vmul.f32 %v309, %v327
    %v332 = vsel %vm328, %v308, %v330
    %v333 = vsel %vm329, %v309, %v331
    %v334 = vpack.c.bf16 %v332, %v332
    %v335 = vpack.c.bf16 %v333, %v333
    %v337 = vlaneseq
    %v338 = vshrl.u32 %v337, 7
    %v339 = vsub.s32 0, %v338
    %v340 = vrot.slane %v180, %v339
    %v341 = vlaneseq
    %v342 = vshrl.u32 %v341, 7
    %v343 = vsub.s32 1, %v342
    %v344 = vrot.slane %v180, %v343
    %v379 = vunpack.c.l.b16 %v83
    %v380 = vunpack.c.h.b16 %v83
    %v381 = vunpack.c.l.b16 %v84
    %v382 = vunpack.c.h.b16 %v84
    %v383 = vunpack.c.l.b16 %v85
    %v384 = vunpack.c.h.b16 %v85
    %v385 = vunpack.c.l.b16 %v86
    %v386 = vunpack.c.h.b16 %v86
    %v387 = vunpack.c.l.b16 %v87
    %v388 = vunpack.c.h.b16 %v87
    %v389 = vunpack.c.l.b16 %v88
    %v390 = vunpack.c.h.b16 %v88
    %v391 = vunpack.c.l.b16 %v89
    %v392 = vunpack.c.h.b16 %v89
    %v393 = vunpack.c.l.b16 %v90
    %v394 = vunpack.c.h.b16 %v90
    %v395 = vunpack.c.l.b16 %v91
    %v396 = vunpack.c.h.b16 %v91
    %v397 = vunpack.c.l.b16 %v92
    %v398 = vunpack.c.h.b16 %v92
    %v399 = vunpack.c.l.b16 %v93
    %v400 = vunpack.c.h.b16 %v93
    %v401 = vunpack.c.l.b16 %v94
    %v402 = vunpack.c.h.b16 %v94
    %v403 = vunpack.c.l.b16 %v95
    %v404 = vunpack.c.h.b16 %v95
    %v405 = vunpack.c.l.b16 %v96
    %v406 = vunpack.c.h.b16 %v96
    %v407 = vunpack.c.l.b16 %v97
    %v408 = vunpack.c.h.b16 %v97
    %v409 = vunpack.c.l.b16 %v98
    %v410 = vunpack.c.h.b16 %v98
    %v411 = vunpack.c.l.b16 %v99
    %v412 = vunpack.c.h.b16 %v99
    %v413 = vunpack.c.l.b16 %v100
    %v414 = vunpack.c.h.b16 %v100
    %v415 = vunpack.c.l.b16 %v101
    %v416 = vunpack.c.h.b16 %v101
    %v417 = vunpack.c.l.b16 %v102
    %v418 = vunpack.c.h.b16 %v102
    %v419 = vunpack.c.l.b16 %v103
    %v420 = vunpack.c.h.b16 %v103
    %v421 = vunpack.c.l.b16 %v104
    %v422 = vunpack.c.h.b16 %v104
    %v423 = vunpack.c.l.b16 %v105
    %v424 = vunpack.c.h.b16 %v105
    %v425 = vunpack.c.l.b16 %v106
    %v426 = vunpack.c.h.b16 %v106
    %v427 = vunpack.c.l.b16 %v107
    %v428 = vunpack.c.h.b16 %v107
    %v429 = vunpack.c.l.b16 %v108
    %v430 = vunpack.c.h.b16 %v108
    %v431 = vunpack.c.l.b16 %v109
    %v432 = vunpack.c.h.b16 %v109
    %v433 = vunpack.c.l.b16 %v110
    %v434 = vunpack.c.h.b16 %v110
    %v435 = vunpack.c.l.b16 %v111
    %v436 = vunpack.c.h.b16 %v111
    %v437 = vunpack.c.l.b16 %v112
    %v438 = vunpack.c.h.b16 %v112
    %v439 = vunpack.c.l.b16 %v113
    %v440 = vunpack.c.h.b16 %v113
    %v441 = vunpack.c.l.b16 %v114
    %v442 = vunpack.c.h.b16 %v114
    %v443 = vpack.c.b16 %v381, %v379
    %v444 = vpack.c.b16 %v382, %v380
    %v445 = vpack.c.b16 %v385, %v383
    %v446 = vpack.c.b16 %v386, %v384
    %v447 = vpack.c.b16 %v389, %v387
    %v448 = vpack.c.b16 %v390, %v388
    %v449 = vpack.c.b16 %v393, %v391
    %v450 = vpack.c.b16 %v394, %v392
    %v451 = vpack.c.b16 %v397, %v395
    %v452 = vpack.c.b16 %v398, %v396
    %v453 = vpack.c.b16 %v401, %v399
    %v454 = vpack.c.b16 %v402, %v400
    %v455 = vpack.c.b16 %v405, %v403
    %v456 = vpack.c.b16 %v406, %v404
    %v457 = vpack.c.b16 %v409, %v407
    %v458 = vpack.c.b16 %v410, %v408
    %v459 = vpack.c.b16 %v413, %v411
    %v460 = vpack.c.b16 %v414, %v412
    %v461 = vpack.c.b16 %v417, %v415
    %v462 = vpack.c.b16 %v418, %v416
    %v463 = vpack.c.b16 %v421, %v419
    %v464 = vpack.c.b16 %v422, %v420
    %v465 = vpack.c.b16 %v425, %v423
    %v466 = vpack.c.b16 %v426, %v424
    %v467 = vpack.c.b16 %v429, %v427
    %v468 = vpack.c.b16 %v430, %v428
    %v469 = vpack.c.b16 %v433, %v431
    %v470 = vpack.c.b16 %v434, %v432
    %v471 = vpack.c.b16 %v437, %v435
    %v472 = vpack.c.b16 %v438, %v436
    %v473 = vpack.c.b16 %v441, %v439
    %v474 = vpack.c.b16 %v442, %v440
    %507 = vmatprep.subr.bf16.mxu0 %v458
    %508 = vmatpush1.bf16.msra.mxu0 %v457
    %509 = vmatprep.subr.bf16.mxu0 %v456
    %510 = vmatpush1.bf16.msra.mxu0 %v455
    %511 = vmatprep.subr.bf16.mxu0 %v454
    %512 = vmatpush1.bf16.msra.mxu0 %v453
    %513 = vmatprep.subr.bf16.mxu0 %v452
    %514 = vmatpush1.bf16.msra.mxu0 %v451
    %515 = vmatprep.subr.bf16.mxu0 %v450
    %516 = vmatpush1.bf16.msra.mxu0 %v449
    %517 = vmatprep.subr.bf16.mxu0 %v448
    %518 = vmatpush1.bf16.msra.mxu0 %v447
    %519 = vmatprep.subr.bf16.mxu0 %v446
    %520 = vmatpush1.bf16.msra.mxu0 %v445
    %521 = vmatprep.subr.bf16.mxu0 %v444
    %522 = vmatpush1.bf16.msra.mxu0 %v443
    %523 = vmatprep.subr.bf16.mxu0 %v474
    %524 = vmatpush2.bf16.msra.mxu0 %v473
    %525 = vmatprep.subr.bf16.mxu0 %v472
    %526 = vmatpush2.bf16.msra.mxu0 %v471
    %527 = vmatprep.subr.bf16.mxu0 %v470
    %528 = vmatpush2.bf16.msra.mxu0 %v469
    %529 = vmatprep.subr.bf16.mxu0 %v468
    %530 = vmatpush2.bf16.msra.mxu0 %v467
    %531 = vmatprep.subr.bf16.mxu0 %v466
    %532 = vmatpush2.bf16.msra.mxu0 %v465
    %533 = vmatprep.subr.bf16.mxu0 %v464
    %534 = vmatpush2.bf16.msra.mxu0 %v463
    %535 = vmatprep.subr.bf16.mxu0 %v462
    %536 = vmatpush2.bf16.msra.mxu0 %v461
    %537 = vmatprep.subr.bf16.mxu0 %v460
    %538 = vmatpush2.bf16.msra.mxu0 %v459
    %539 = vmatprep.mubr.bf16.mxu0 %v335
    %540 = vmatmul.mubr.bf16.gmra.mxu0 %v334
    %v541 = vpop.f32.mrf.mxu0
    %v542 = vadd.f32 %v340, %v541
    %v543 = vpop.f32.mrf.mxu0
    %v544 = vadd.f32 %v344, %v543
    %v545 = vpop.f32.mrf.mxu0
    %v546 = vpop.f32.mrf.mxu0
    %547 = vdwg.mxu0
    %v548 = vmin.f32 %v542, 20.0
    %v549 = vmin.f32 %v544, 20.0
    %v550 = vmul.f32 %v548, 1.442695
    %v551 = vpow.pop %v550
    %v552 = vmul.f32 %v549, 1.442695
    %v553 = vpow.pop %v552
    %v554 = vadd.f32 %v551, 1.0
    %v555 = vadd.f32 %v553, 1.0
    %v556 = vmul.f32 %v554, %v554
    %v557 = vmul.f32 %v555, %v555
    %v558 = vsub.f32 %v556, 1.0
    %v559 = vsub.f32 %v557, 1.0
    %v560 = vadd.f32 %v556, 1.0
    %v561 = vadd.f32 %v557, 1.0
    %v562 = vrcp.pop %v560
    %v563 = vrcp.pop %v561
    %v564 = vmul.f32 %v558, %v562
    %v565 = vmul.f32 %v559, %v563
    %vm566 = vcmp.gt.f32.partialorder %v542, 20.0
    %vm567 = vcmp.gt.f32.partialorder %v544, 20.0
    %v568 = vmul.f32 %v542, %v564
    %v569 = vmul.f32 %v544, %v565
    %v570 = vsel %vm566, %v542, %v568
    %v571 = vsel %vm567, %v544, %v569
    %v572 = vpack.c.bf16 %v570, %v570
    %v573 = vpack.c.bf16 %v571, %v571
    %v575 = vlaneseq
    %v576 = vshrl.u32 %v575, 7
    %v577 = vsub.s32 0, %v576
    %v578 = vrot.slane %v181, %v577
    %v579 = vlaneseq
    %v580 = vshrl.u32 %v579, 7
    %v581 = vsub.s32 1, %v580
    %v582 = vrot.slane %v181, %v581
    %v617 = vunpack.c.l.b16 %v115
    %v618 = vunpack.c.h.b16 %v115
    %v619 = vunpack.c.l.b16 %v116
    %v620 = vunpack.c.h.b16 %v116
    %v621 = vunpack.c.l.b16 %v117
    %v622 = vunpack.c.h.b16 %v117
    %v623 = vunpack.c.l.b16 %v118
    %v624 = vunpack.c.h.b16 %v118
    %v625 = vunpack.c.l.b16 %v119
    %v626 = vunpack.c.h.b16 %v119
    %v627 = vunpack.c.l.b16 %v120
    %v628 = vunpack.c.h.b16 %v120
    %v629 = vunpack.c.l.b16 %v121
    %v630 = vunpack.c.h.b16 %v121
    %v631 = vunpack.c.l.b16 %v122
    %v632 = vunpack.c.h.b16 %v122
    %v633 = vunpack.c.l.b16 %v123
    %v634 = vunpack.c.h.b16 %v123
    %v635 = vunpack.c.l.b16 %v124
    %v636 = vunpack.c.h.b16 %v124
    %v637 = vunpack.c.l.b16 %v125
    %v638 = vunpack.c.h.b16 %v125
    %v639 = vunpack.c.l.b16 %v126
    %v640 = vunpack.c.h.b16 %v126
    %v641 = vunpack.c.l.b16 %v127
    %v642 = vunpack.c.h.b16 %v127
    %v643 = vunpack.c.l.b16 %v128
    %v644 = vunpack.c.h.b16 %v128
    %v645 = vunpack.c.l.b16 %v129
    %v646 = vunpack.c.h.b16 %v129
    %v647 = vunpack.c.l.b16 %v130
    %v648 = vunpack.c.h.b16 %v130
    %v649 = vunpack.c.l.b16 %v131
    %v650 = vunpack.c.h.b16 %v131
    %v651 = vunpack.c.l.b16 %v132
    %v652 = vunpack.c.h.b16 %v132
    %v653 = vunpack.c.l.b16 %v133
    %v654 = vunpack.c.h.b16 %v133
    %v655 = vunpack.c.l.b16 %v134
    %v656 = vunpack.c.h.b16 %v134
    %v657 = vunpack.c.l.b16 %v135
    %v658 = vunpack.c.h.b16 %v135
    %v659 = vunpack.c.l.b16 %v136
    %v660 = vunpack.c.h.b16 %v136
    %v661 = vunpack.c.l.b16 %v137
    %v662 = vunpack.c.h.b16 %v137
    %v663 = vunpack.c.l.b16 %v138
    %v664 = vunpack.c.h.b16 %v138
    %v665 = vunpack.c.l.b16 %v139
    %v666 = vunpack.c.h.b16 %v139
    %v667 = vunpack.c.l.b16 %v140
    %v668 = vunpack.c.h.b16 %v140
    %v669 = vunpack.c.l.b16 %v141
    %v670 = vunpack.c.h.b16 %v141
    %v671 = vunpack.c.l.b16 %v142
    %v672 = vunpack.c.h.b16 %v142
    %v673 = vunpack.c.l.b16 %v143
    %v674 = vunpack.c.h.b16 %v143
    %v675 = vunpack.c.l.b16 %v144
    %v676 = vunpack.c.h.b16 %v144
    %v677 = vunpack.c.l.b16 %v145
    %v678 = vunpack.c.h.b16 %v145
    %v679 = vunpack.c.l.b16 %v146
    %v680 = vunpack.c.h.b16 %v146
    %v681 = vpack.c.b16 %v619, %v617
    %v682 = vpack.c.b16 %v620, %v618
    %v683 = vpack.c.b16 %v623, %v621
    %v684 = vpack.c.b16 %v624, %v622
    %v685 = vpack.c.b16 %v627, %v625
    %v686 = vpack.c.b16 %v628, %v626
    %v687 = vpack.c.b16 %v631, %v629
    %v688 = vpack.c.b16 %v632, %v630
    %v689 = vpack.c.b16 %v635, %v633
    %v690 = vpack.c.b16 %v636, %v634
    %v691 = vpack.c.b16 %v639, %v637
    %v692 = vpack.c.b16 %v640, %v638
    %v693 = vpack.c.b16 %v643, %v641
    %v694 = vpack.c.b16 %v644, %v642
    %v695 = vpack.c.b16 %v647, %v645
    %v696 = vpack.c.b16 %v648, %v646
    %v697 = vpack.c.b16 %v651, %v649
    %v698 = vpack.c.b16 %v652, %v650
    %v699 = vpack.c.b16 %v655, %v653
    %v700 = vpack.c.b16 %v656, %v654
    %v701 = vpack.c.b16 %v659, %v657
    %v702 = vpack.c.b16 %v660, %v658
    %v703 = vpack.c.b16 %v663, %v661
    %v704 = vpack.c.b16 %v664, %v662
    %v705 = vpack.c.b16 %v667, %v665
    %v706 = vpack.c.b16 %v668, %v666
    %v707 = vpack.c.b16 %v671, %v669
    %v708 = vpack.c.b16 %v672, %v670
    %v709 = vpack.c.b16 %v675, %v673
    %v710 = vpack.c.b16 %v676, %v674
    %v711 = vpack.c.b16 %v679, %v677
    %v712 = vpack.c.b16 %v680, %v678
    %745 = vmatprep.subr.bf16.mxu0 %v696
    %746 = vmatpush1.bf16.msra.mxu0 %v695
    %747 = vmatprep.subr.bf16.mxu0 %v694
    %748 = vmatpush1.bf16.msra.mxu0 %v693
    %749 = vmatprep.subr.bf16.mxu0 %v692
    %750 = vmatpush1.bf16.msra.mxu0 %v691
    %751 = vmatprep.subr.bf16.mxu0 %v690
    %752 = vmatpush1.bf16.msra.mxu0 %v689
    %753 = vmatprep.subr.bf16.mxu0 %v688
    %754 = vmatpush1.bf16.msra.mxu0 %v687
    %755 = vmatprep.subr.bf16.mxu0 %v686
    %756 = vmatpush1.bf16.msra.mxu0 %v685
    %757 = vmatprep.subr.bf16.mxu0 %v684
    %758 = vmatpush1.bf16.msra.mxu0 %v683
    %759 = vmatprep.subr.bf16.mxu0 %v682
    %760 = vmatpush1.bf16.msra.mxu0 %v681
    %761 = vmatprep.subr.bf16.mxu0 %v712
    %762 = vmatpush2.bf16.msra.mxu0 %v711
    %763 = vmatprep.subr.bf16.mxu0 %v710
    %764 = vmatpush2.bf16.msra.mxu0 %v709
    %765 = vmatprep.subr.bf16.mxu0 %v708
    %766 = vmatpush2.bf16.msra.mxu0 %v707
    %767 = vmatprep.subr.bf16.mxu0 %v706
    %768 = vmatpush2.bf16.msra.mxu0 %v705
    %769 = vmatprep.subr.bf16.mxu0 %v704
    %770 = vmatpush2.bf16.msra.mxu0 %v703
    %771 = vmatprep.subr.bf16.mxu0 %v702
    %772 = vmatpush2.bf16.msra.mxu0 %v701
    %773 = vmatprep.subr.bf16.mxu0 %v700
    %774 = vmatpush2.bf16.msra.mxu0 %v699
    %775 = vmatprep.subr.bf16.mxu0 %v698
    %776 = vmatpush2.bf16.msra.mxu0 %v697
    %777 = vmatprep.mubr.bf16.mxu0 %v573
    %778 = vmatmul.mubr.bf16.gmra.mxu0 %v572
    %v779 = vpop.f32.mrf.mxu0
    %v780 = vadd.f32 %v578, %v779
    %v781 = vpop.f32.mrf.mxu0
    %v782 = vadd.f32 %v582, %v781
    %v783 = vpop.f32.mrf.mxu0
    %v784 = vpop.f32.mrf.mxu0
    %785 = vdwg.mxu0
    %v786 = vmin.f32 %v780, 20.0
    %v787 = vmin.f32 %v782, 20.0
    %v788 = vmul.f32 %v786, 1.442695
    %v789 = vpow.pop %v788
    %v790 = vmul.f32 %v787, 1.442695
    %v791 = vpow.pop %v790
    %v792 = vadd.f32 %v789, 1.0
    %v793 = vadd.f32 %v791, 1.0
    %v794 = vmul.f32 %v792, %v792
    %v795 = vmul.f32 %v793, %v793
    %v796 = vsub.f32 %v794, 1.0
    %v797 = vsub.f32 %v795, 1.0
    %v798 = vadd.f32 %v794, 1.0
    %v799 = vadd.f32 %v795, 1.0
    %v800 = vrcp.pop %v798
    %v801 = vrcp.pop %v799
    %v802 = vmul.f32 %v796, %v800
    %v803 = vmul.f32 %v797, %v801
    %vm804 = vcmp.gt.f32.partialorder %v780, 20.0
    %vm805 = vcmp.gt.f32.partialorder %v782, 20.0
    %v806 = vmul.f32 %v780, %v802
    %v807 = vmul.f32 %v782, %v803
    %v808 = vsel %vm804, %v780, %v806
    %v809 = vsel %vm805, %v782, %v807
    %v810 = vpack.c.bf16 %v808, %v808
    %v811 = vpack.c.bf16 %v809, %v809
    %v813 = vlaneseq
    %v814 = vshrl.u32 %v813, 7
    %v815 = vsub.s32 0, %v814
    %v816 = vrot.slane %v182, %v815
    %v850 = vunpack.c.l.b16 %v147
    %v851 = vunpack.c.l.b16 %v148
    %v852 = vunpack.c.l.b16 %v149
    %v853 = vunpack.c.l.b16 %v150
    %v854 = vunpack.c.l.b16 %v151
    %v855 = vunpack.c.l.b16 %v152
    %v856 = vunpack.c.l.b16 %v153
    %v857 = vunpack.c.l.b16 %v154
    %v858 = vunpack.c.l.b16 %v155
    %v859 = vunpack.c.l.b16 %v156
    %v860 = vunpack.c.l.b16 %v157
    %v861 = vunpack.c.l.b16 %v158
    %v862 = vunpack.c.l.b16 %v159
    %v863 = vunpack.c.l.b16 %v160
    %v864 = vunpack.c.l.b16 %v161
    %v865 = vunpack.c.l.b16 %v162
    %v866 = vunpack.c.l.b16 %v163
    %v867 = vunpack.c.l.b16 %v164
    %v868 = vunpack.c.l.b16 %v165
    %v869 = vunpack.c.l.b16 %v166
    %v870 = vunpack.c.l.b16 %v167
    %v871 = vunpack.c.l.b16 %v168
    %v872 = vunpack.c.l.b16 %v169
    %v873 = vunpack.c.l.b16 %v170
    %v874 = vunpack.c.l.b16 %v171
    %v875 = vunpack.c.l.b16 %v172
    %v876 = vunpack.c.l.b16 %v173
    %v877 = vunpack.c.l.b16 %v174
    %v878 = vunpack.c.l.b16 %v175
    %v879 = vunpack.c.l.b16 %v176
    %v880 = vunpack.c.l.b16 %v177
    %v881 = vunpack.c.l.b16 %v178
    %v882 = vpack.c.b16 %v851, %v850
    %v883 = vpack.c.b16 %v853, %v852
    %v884 = vpack.c.b16 %v855, %v854
    %v885 = vpack.c.b16 %v857, %v856
    %v886 = vpack.c.b16 %v859, %v858
    %v887 = vpack.c.b16 %v861, %v860
    %v888 = vpack.c.b16 %v863, %v862
    %v889 = vpack.c.b16 %v865, %v864
    %v890 = vpack.c.b16 %v867, %v866
    %v891 = vpack.c.b16 %v869, %v868
    %v892 = vpack.c.b16 %v871, %v870
    %v893 = vpack.c.b16 %v873, %v872
    %v894 = vpack.c.b16 %v875, %v874
    %v895 = vpack.c.b16 %v877, %v876
    %v896 = vpack.c.b16 %v879, %v878
    %v897 = vpack.c.b16 %v881, %v880
    %914 = vmatprep.subr.bf16.mxu0 0
    %915 = vmatpush1.bf16.msra.mxu0 %v889
    %916 = vmatprep.subr.bf16.mxu0 0
    %917 = vmatpush1.bf16.msra.mxu0 %v888
    %918 = vmatprep.subr.bf16.mxu0 0
    %919 = vmatpush1.bf16.msra.mxu0 %v887
    %920 = vmatprep.subr.bf16.mxu0 0
    %921 = vmatpush1.bf16.msra.mxu0 %v886
    %922 = vmatprep.subr.bf16.mxu0 0
    %923 = vmatpush1.bf16.msra.mxu0 %v885
    %924 = vmatprep.subr.bf16.mxu0 0
    %925 = vmatpush1.bf16.msra.mxu0 %v884
    %926 = vmatprep.subr.bf16.mxu0 0
    %927 = vmatpush1.bf16.msra.mxu0 %v883
    %928 = vmatprep.subr.bf16.mxu0 0
    %929 = vmatpush1.bf16.msra.mxu0 %v882
    %930 = vmatprep.subr.bf16.mxu0 0
    %931 = vmatpush2.bf16.msra.mxu0 %v897
    %932 = vmatprep.subr.bf16.mxu0 0
    %933 = vmatpush2.bf16.msra.mxu0 %v896
    %934 = vmatprep.subr.bf16.mxu0 0
    %935 = vmatpush2.bf16.msra.mxu0 %v895
    %936 = vmatprep.subr.bf16.mxu0 0
    %937 = vmatpush2.bf16.msra.mxu0 %v894
    %938 = vmatprep.subr.bf16.mxu0 0
    %939 = vmatpush2.bf16.msra.mxu0 %v893
    %940 = vmatprep.subr.bf16.mxu0 0
    %941 = vmatpush2.bf16.msra.mxu0 %v892
    %942 = vmatprep.subr.bf16.mxu0 0
    %943 = vmatpush2.bf16.msra.mxu0 %v891
    %944 = vmatprep.subr.bf16.mxu0 0
    %945 = vmatpush2.bf16.msra.mxu0 %v890
    %946 = vmatprep.mubr.bf16.mxu0 %v811
    %947 = vmatmul.mubr.bf16.gmra.mxu0 %v810
    %v948 = vpop.f32.mrf.mxu0
    %v949 = vadd.f32 %v816, %v948
    %v950 = vpop.f32.mrf.mxu0
    %v951 = vpop.f32.mrf.mxu0
    %v952 = vpop.f32.mrf.mxu0
    %953 = vdwg.mxu0
    %954 = vst [vmem:[%s11] sm:$0xff] %v949
    // Predicated region
    $region58: #{encoder_forward.1} parent=1 // pred_check
      _
    $region59: #{encoder_forward.1} parent=1 // pred_check_branch
      %956 = sbr.rel (0) target = $region61
    $region60: #{encoder_forward.1} parent=1 // pred_region
      _
    $region61: #{encoder_forward.1} parent=1 // pred_fallthru
      _
    // Predicated region
    $region62: #{encoder_forward.1} parent=1 // pred_check
      _
    $region63: #{encoder_forward.1} parent=1 // pred_check_branch
      %958 = sbr.rel (0) target = $region65
    $region64: #{encoder_forward.1} parent=1 // pred_region
      _
    $region65: #{encoder_forward.1} parent=1 // pred_fallthru
      _
    %959 = vsyncpa [#allocation3], 1
    %960 = vsyncpa [#allocation5], 1

</llo_original>
